<compile_context>
chip_gen: v5e
topology: v5e:2x2
jax: 0.10.0
libtpu: 0.0.40
codegen_flags: <defaults>
</compile_context>

<pallas_src>
import math

import jax
import jax.numpy as jnp
from jax.experimental import pallas as pl
from jax.experimental.pallas import tpu as pltpu

_LANE = 128


# ---------------------------------------------------------------------------
# Pallas kernel: lane-dense broadcast add of the f32 positional slab tile onto
# a (TB, 1, TL) tile of x.  VPU-only work, fully hidden under the HBM DMAs.
# ---------------------------------------------------------------------------
def _add_pos_kernel(pos_ref, x_ref, o_ref):
    # pos_ref: (1, TL)      float32 positional slab tile (cls entries already 0)
    # x_ref:   (TB, 1, TL)  x tile
    # o_ref:   (TB, 1, TL)  output tile
    # Implicit numpy broadcast over the leading batch dim only (free — not a
    # vreg dim); add in f32, single cast on store.
    o_ref[...] = (x_ref[...].astype(jnp.float32) + pos_ref[...]).astype(o_ref.dtype)


# ---------------------------------------------------------------------------
# One-time, batch-independent math in plain JAX (wrapper side)
# ---------------------------------------------------------------------------
def _build_sine_pos(H, W, C, temperature, normalize, scale):
    half = C // 2
    ones = jnp.ones((H, W), jnp.float32)
    y_embed = jnp.cumsum(ones, axis=0)                  # row index + 1
    x_embed = jnp.cumsum(ones, axis=1)                  # col index + 1
    if normalize:
        eps = 1e-6
        y_embed = y_embed / (y_embed[-1:, :] + eps) * scale
        x_embed = x_embed / (x_embed[:, -1:] + eps) * scale

    dim_t = jnp.arange(half, dtype=jnp.float32)
    dim_t = jnp.power(jnp.float32(temperature), 2.0 * (dim_t // 2) / half)

    pos_x = x_embed[:, :, None] / dim_t                 # (H, W, half)
    pos_y = y_embed[:, :, None] / dim_t                 # (H, W, half)
    pos_x = jnp.stack((jnp.sin(pos_x[:, :, 0::2]),
                       jnp.cos(pos_x[:, :, 1::2])), axis=3).reshape(H, W, half)
    pos_y = jnp.stack((jnp.sin(pos_y[:, :, 0::2]),
                       jnp.cos(pos_y[:, :, 1::2])), axis=3).reshape(H, W, half)
    return jnp.concatenate((pos_y, pos_x), axis=2)      # (H, W, C) float32


def _depthwise_conv3x3(pos, conv_w, conv_b, H, W, C):
    """Depthwise 3x3 conv, padding=1, channels-last; batch-independent, done once."""
    pos_pad = jnp.pad(pos, ((1, 1), (1, 1), (0, 0)))                    # (H+2, W+2, C)
    w_hwc = jnp.transpose(conv_w[:, 0], (1, 2, 0)).astype(jnp.float32)  # (3, 3, C)
    acc = jnp.broadcast_to(conv_b.astype(jnp.float32)[None, None, :], (H, W, C))
    for kh in range(3):
        for kw in range(3):
            acc = acc + pos_pad[kh:kh + H, kw:kw + W, :] * w_hwc[kh, kw][None, None, :]
    return acc                                                           # (H, W, C) f32


def _ceil_div(a, b):
    return -(-a // b)


def _pick_tiles(B, F, x_itemsize, target_bytes):
    """Pick (batch_tile TB, lane_tile TL) for the flattened (B, 1, F) view."""
    # Lane tile: the full feature axis if it fits, otherwise a multiple of 128,
    # sized off the f32 pos slab so both the x block and the pos block stay
    # <= target_bytes regardless of model size (bounds VMEM for any N*C).
    if F * 4 <= target_bytes:
        tl = F
    else:
        tl = max(_LANE, (target_bytes // (4 * _LANE)) * _LANE)
    # Batch tile: fill target_bytes with TL-wide rows.
    tb = max(1, min(B, target_bytes // max(1, tl * x_itemsize)))
    # Keep >= 4 batch tiles when the batch allows it (>= 2 per TC on v7x).
    tb = min(tb, max(1, B // 4)) if B >= 4 else min(tb, B)
    # Prefer an even number of batch tiles so the "parallel" batch axis splits
    # evenly across v7x's two TensorCores (cheap: the kernel is memory-bound).
    if _ceil_div(B, tb) % 2 == 1:
        for cand in range(tb, 0, -1):
            if _ceil_div(B, cand) % 2 == 0:
                tb = cand
                break
    return tb, tl


# ---------------------------------------------------------------------------
# Wrapper implementing GlobalPosEmbed.forward
# ---------------------------------------------------------------------------
def global_pos_embed(x, conv_w, conv_b, *, temperature=10000.0, normalize=True,
                     scale=2.0 * math.pi, target_block_bytes=6 << 20,
                     donate_x=False):
    """x: (B, N, C); conv_w: (C, 1, 3, 3) (PyTorch depthwise layout); conv_b: (C,)"""
    B, N, C = x.shape
    unit_scale = math.isqrt((N - 1) // 12)              # exact integer sqrt
    H, W = 4 * unit_scale, 3 * unit_scale
    assert N == 1 + H * W and C % 2 == 0

    # Batch-independent positional slab (float32): sine/cos embed -> depthwise
    # 3x3 conv (+bias) -> zero cls row prepended.  Shape (N, C).
    pos = _build_sine_pos(H, W, C, temperature, normalize, scale)
    pos_conv = _depthwise_conv3x3(pos, conv_w, conv_b, H, W, C)          # (H, W, C)
    pos_full = jnp.concatenate(
        [jnp.zeros((1, C), jnp.float32), pos_conv.reshape(H * W, C)], axis=0)  # (N, C)

    # Lane-dense views: flatten each image's (N, C) into one feature axis so the
    # last (lane) block dim is the full axis or a big multiple of 128, even when
    # C % 128 != 0.  Row-major reshapes of contiguous arrays -> no data movement.
    F = N * C
    x_flat = x.reshape(B, 1, F)
    pos_flat = pos_full.reshape(1, F)                   # stays float32 in VMEM

    TB, TL = _pick_tiles(B, F, x.dtype.itemsize, target_block_bytes)
    grid = (pl.cdiv(B, TB), pl.cdiv(F, TL))             # partial last blocks OK

    # Explicit VMEM budget: double-buffered x-in + out blocks, double-buffered
    # pos block (fetched once, but budget both buffers), + headroom for Mosaic
    # internal scratch.  Stays under v7x's 64 MiB physical VMEM.
    x_block_bytes = TB * TL * x.dtype.itemsize
    pos_block_bytes = TL * 4
    vmem_limit = 4 * x_block_bytes + 2 * pos_block_bytes + (8 << 20)
    vmem_limit = int(max(16 << 20, min(vmem_limit, 48 << 20)))

    out_flat = pl.pallas_call(
        _add_pos_kernel,
        out_shape=jax.ShapeDtypeStruct((B, 1, F), x.dtype),
        grid_spec=pltpu.PrefetchScalarGridSpec(
            num_scalar_prefetch=0,
            grid=grid,
            in_specs=[
                # Resident f32 positional slab tile (block index constant along
                # the batch axis -> fetched once per lane tile, kept in VMEM).
                pl.BlockSpec((1, TL), lambda b, l: (0, l)),
                # Batch/feature-tiled x.
                pl.BlockSpec((TB, 1, TL), lambda b, l: (b, 0, l)),
            ],
            out_specs=pl.BlockSpec((TB, 1, TL), lambda b, l: (b, 0, l)),
        ),
        compiler_params=pltpu.CompilerParams(
            dimension_semantics=("parallel", "parallel"),
            vmem_limit_bytes=vmem_limit,
        ),
        # Only safe if the caller can donate x (alias x buffer as the output).
        input_output_aliases=({1: 0} if donate_x else {}),
    )(pos_flat, x_flat)
    return out_flat.reshape(B, N, C)


# ---------------------------------------------------------------------------
# Pure-JAX reference (mirrors the PyTorch module) for a correctness check
# ---------------------------------------------------------------------------
def _reference(x, conv_w, conv_b, *, temperature=10000.0,
               normalize=True, scale=2.0 * math.pi):
    B, N, C = x.shape
    u = math.isqrt((N - 1) // 12)
    H, W = 4 * u, 3 * u
    pos = _build_sine_pos(H, W, C, temperature, normalize, scale)
    pos_pad = jnp.pad(pos, ((1, 1), (1, 1), (0, 0)))
    w_hwc = jnp.transpose(conv_w[:, 0], (1, 2, 0))
    acc = jnp.zeros((H, W, C), jnp.float32)
    for kh in range(3):
        for kw in range(3):
            acc = acc + pos_pad[kh:kh + H, kw:kw + W, :] * w_hwc[kh, kw][None, None, :]
    acc = acc + conv_b[None, None, :]
    out_patch = x[:, 1:, :] + acc.reshape(1, H * W, C)
    return jnp.concatenate([x[:, :1, :], out_patch], axis=1)


if __name__ == "__main__":
    key = jax.random.PRNGKey(0)
    B, C = 2, 32                      # embed_dim = 32
    u = 1
    H, W = 4 * u, 3 * u
    N = 1 + H * W                     # 13 tokens (1 cls + 12 patches)

    k1, k2, k3 = jax.random.split(key, 3)
    x = jax.random.normal(k1, (B, N, C), jnp.float32)
    conv_w = jax.random.normal(k2, (C, 1, 3, 3), jnp.float32) * 0.1   # depthwise 3x3
    conv_b = jax.random.normal(k3, (C,), jnp.float32) * 0.1

    out = jax.block_until_ready(global_pos_embed(x, conv_w, conv_b))
    ref = jax.block_until_ready(_reference(x, conv_w, conv_b))

    assert out.shape == (B, N, C)
    assert jnp.allclose(out, ref, atol=1e-5, rtol=1e-5)
    print("KERNEL_OK")
</pallas_src>

<mosaic_0001>
module attributes {stable_mosaic.version = 11 : i64} {
  func.func @_add_pos_kernel(%arg0: i32, %arg1: i32, %arg2: memref<1x416xf32, #tpu.memory_space<vmem>>, %arg3: memref<1x1x416xf32, #tpu.memory_space<vmem>>, %arg4: memref<1x1x416xf32, #tpu.memory_space<vmem>>) attributes {dimension_semantics = [#tpu.dimension_semantics<parallel>, #tpu.dimension_semantics<parallel>], iteration_bounds = array<i64: 2, 1>, scalar_prefetch = 0 : i64, scratch_operands = 0 : i64, tpu.core_type = #tpu.core_type<tc>, window_params = [{transform_indices = @transform_0, window_bounds = array<i64: 1, 416>}, {transform_indices = @transform_1, window_bounds = array<i64: 1, 1, 416>}, {transform_indices = @transform_2, window_bounds = array<i64: 1, 1, 416>}]} {
    %c0 = arith.constant 0 : index
    %c0_0 = arith.constant 0 : index
    %c0_1 = arith.constant 0 : index
    %0 = vector.load %arg3[%c0, %c0_0, %c0_1] : memref<1x1x416xf32, #tpu.memory_space<vmem>>, vector<1x1x416xf32>
    %c0_2 = arith.constant 0 : index
    %c0_3 = arith.constant 0 : index
    %1 = vector.load %arg2[%c0_2, %c0_3] : memref<1x416xf32, #tpu.memory_space<vmem>>, vector<1x416xf32>
    %2 = vector.shape_cast %1 : vector<1x416xf32> to vector<1x1x416xf32>
    %3 = arith.addf %0, %2 : vector<1x1x416xf32>
    %c0_4 = arith.constant 0 : index
    %c0_5 = arith.constant 0 : index
    %c0_6 = arith.constant 0 : index
    %4 = vector.load %arg4[%c0_4, %c0_5, %c0_6] : memref<1x1x416xf32, #tpu.memory_space<vmem>>, vector<1x1x416xf32>
    tpu.vector_store %arg4[%c0_4, %c0_5, %c0_6], %3 {strides = array<i32>} : memref<1x1x416xf32, #tpu.memory_space<vmem>>, vector<1x1x416xf32>,
    return
  }
  func.func @transform_0(%arg0: i32, %arg1: i32) -> (i32, i32) {
    %c0_i32 = arith.constant 0 : i32
    %c0_i32_0 = arith.constant 0 : i32
    return %c0_i32, %arg1 : i32, i32
  }
  func.func @transform_1(%arg0: i32, %arg1: i32) -> (i32, i32, i32) {
    %c0_i32 = arith.constant 0 : i32
    %c0_i32_0 = arith.constant 0 : i32
    return %arg0, %c0_i32, %arg1 : i32, i32, i32
  }
  func.func @transform_2(%arg0: i32, %arg1: i32) -> (i32, i32, i32) {
    %c0_i32 = arith.constant 0 : i32
    %c0_i32_0 = arith.constant 0 : i32
    return %arg0, %c0_i32, %arg1 : i32, i32, i32
  }
}

</mosaic_0001>

<llo_original>
// kernel: tpu_custom_call.1
$region0: #{tpu_custom_call.1}
  #allocation0 [shape = 'u32[]', space=smem, size = 0x4, offset = 0x4, fixed_abs, tag = 'smem constant byte address 0x4 - core index']
  #allocation1 [shape = 'u32[72,128]{1,0:T(1,128)}', space=vmem, size = 0x9000, scoped, tag = 'internal scratch']
  %s0 = inlined_call_operand.hbm [shape: f32[1,416], index: 0, kind: input, shape index: {}]
  %s1 = inlined_call_operand.hbm [shape: f32[2,1,416], index: 1, kind: input, shape index: {}]
  %s2 = inlined_call_operand.hbm [shape: f32[2,1,416], index: 2, kind: output, shape index: {}]
  %s3 = sld [smem:[#allocation0]]
  $region49: #{tpu_custom_call.1} parent=0
    _
  %s5 = ssub.s32 1, %s3
  %s6 = scalar_select 0, %s5, %s3
  $region1: #{tpu_custom_call.1} parent=0
    #allocation2 [shape = 'u8[2048]{0}', space=vmem, size = 0x800, scoped, tag = 'input window, operand 0, single buffered']
    #allocation3 [shape = 's32[2]{0}', space=sflag, size = 0x8, scoped, tag = 'scoped memory for tpu_custom_call.1']
    #allocation4 [shape = 's32[2]{0}', space=sflag, size = 0x8, scoped, tag = 'scoped memory for tpu_custom_call.1']
    #allocation5 [shape = 'u8[4096]{0}', space=vmem, size = 0x1000, scoped, tag = 'input window, operand 1']
    #allocation6 [shape = 's32[2]{0}', space=sflag, size = 0x8, scoped, tag = 'scoped memory for tpu_custom_call.1']
    #allocation7 [shape = 'u8[4096]{0}', space=vmem, size = 0x1000, scoped, tag = 'output window, operand 0']
    %7 = vsyncpa [#allocation3], 0
    %8 = vsyncpa [#allocation6], 0
    %s9 = scalar_lea.sflag [#allocation6], 1
    %10 = vsyncpa %s9, 0
    %11 = vsyncpa [#allocation4], 0
    %s12 = scalar_lea.sflag [#allocation4], 1
    %13 = vsyncpa %s12, 0
    loop: start=0, step=1, limit=4
    $region2: #{tpu_custom_call.1} parent=1 // loop_pre_header
      _
    $region3: #{tpu_custom_call.1} parent=1 // loop_header
      %s15 = sphi 0, %s19
      %p16 = scmp.ge.s32.totalorder %s15, 4
      %s22 = sphi 0, %s34
      %s23 = sphi 0, %s30
      %s24 = sphi 0, %s22
      %s25 = sphi 0, %s23
      %s26 = sphi 0, %s24
      %s27 = sphi 0, %s25
      %s37 = sphi 0, %s39
      %s40 = sphi 0, %s37
      %s41 = sphi 0, %s40
      %s57 = sphi 0, %s41
      %s65 = sphi 0, %s67
      %s68 = sphi 0, %s65
      %s69 = sphi 0, %s68
      %s85 = sphi 0, %s69
      %s93 = sphi 0, %s95
      %s96 = sphi 0, %s93
      %s97 = sphi 0, %s96
      %s113 = sphi 0, %s97
    $region4: #{tpu_custom_call.1} parent=1 // loop_header_branch
      %18 = sbr.rel (%p16) target = $region8
    $region5: #{tpu_custom_call.1} parent=1 // loop_body
      %s20 = ssub.s32 %s15, 1
      %s21 = ssub.s32 %s15, 2
      %s28 = sadd.s32 1, %s23
      %p29 = scmp.ge.s32.totalorder %s28, 1
      %s30 = scalar_select %p29, 0, %s28
      %s31 = sadd.s32 1, %s22
      %s32 = scalar_select %p29, %s31, %s22
      %p33 = scmp.ge.s32.totalorder %s32, 2
      %s34 = scalar_select %p33, 0, %s32
      %s35 = ssub.s32 %s23, %s30
      %p36 = scmp.eq.s32.totalorder %s35, 0
      %s38 = sadd.s32 %s37, 1
      %s39 = scalar_select %p36, %s37, %s38
      %p42 = pneg %p36
      %p43 = scmp.eq.s32.totalorder %s15, 1
      %p44 = por %p42, %p43
      %p45 = scmp.ne.s32.totalorder %s37, %s40
      %p46 = scmp.eq.s32.totalorder %s15, 0
      %p47 = por %p45, %p46
      %p48 = scmp.ne.s32.totalorder %s37, %s40
      %p49 = scmp.eq.s32.totalorder %s20, 1
      %p50 = por %p48, %p49
      %p51 = scmp.ne.s32.totalorder %s40, %s41
      %p52 = scmp.eq.s32.totalorder %s20, 0
      %p53 = por %p51, %p52
      %p54 = scmp.ne.s32.totalorder %s40, %s41
      %p55 = scmp.eq.s32.totalorder %s21, 1
      %p56 = por %p54, %p55
      %p58 = scmp.ne.s32.totalorder %s41, %s57
      %p59 = scmp.eq.s32.totalorder %s21, 0
      %p60 = por %p58, %p59
      %s61 = ssub.s32 %s22, %s34
      %s62 = ssub.s32 %s23, %s30
      %s63 = sor.u32 %s61, %s62
      %p64 = scmp.eq.s32.totalorder %s63, 0
      %s66 = sadd.s32 %s65, 1
      %s67 = scalar_select %p64, %s65, %s66
      %p70 = pneg %p64
      %p71 = scmp.eq.s32.totalorder %s15, 1
      %p72 = por %p70, %p71
      %p73 = scmp.ne.s32.totalorder %s65, %s68
      %p74 = scmp.eq.s32.totalorder %s15, 0
      %p75 = por %p73, %p74
      %p76 = scmp.ne.s32.totalorder %s65, %s68
      %p77 = scmp.eq.s32.totalorder %s20, 1
      %p78 = por %p76, %p77
      %p79 = scmp.ne.s32.totalorder %s68, %s69
      %p80 = scmp.eq.s32.totalorder %s20, 0
      %p81 = por %p79, %p80
      %p82 = scmp.ne.s32.totalorder %s68, %s69
      %p83 = scmp.eq.s32.totalorder %s21, 1
      %p84 = por %p82, %p83
      %p86 = scmp.ne.s32.totalorder %s69, %s85
      %p87 = scmp.eq.s32.totalorder %s21, 0
      %p88 = por %p86, %p87
      %s89 = ssub.s32 %s22, %s34
      %s90 = ssub.s32 %s23, %s30
      %s91 = sor.u32 %s89, %s90
      %p92 = scmp.eq.s32.totalorder %s91, 0
      %s94 = sadd.s32 %s93, 1
      %s95 = scalar_select %p92, %s93, %s94
      %p98 = pneg %p92
      %p99 = scmp.eq.s32.totalorder %s15, 1
      %p100 = por %p98, %p99
      %p101 = scmp.ne.s32.totalorder %s93, %s96
      %p102 = scmp.eq.s32.totalorder %s15, 0
      %p103 = por %p101, %p102
      %p104 = scmp.ne.s32.totalorder %s93, %s96
      %p105 = scmp.eq.s32.totalorder %s20, 1
      %p106 = por %p104, %p105
      %p107 = scmp.ne.s32.totalorder %s96, %s97
      %p108 = scmp.eq.s32.totalorder %s20, 0
      %p109 = por %p107, %p108
      %p110 = scmp.ne.s32.totalorder %s96, %s97
      %p111 = scmp.eq.s32.totalorder %s21, 1
      %p112 = por %p110, %p111
      %p114 = scmp.ne.s32.totalorder %s97, %s113
      %p115 = scmp.eq.s32.totalorder %s21, 0
      %p116 = por %p114, %p115
      %p117 = scmp.le.s32.totalorder 1, %s15
      %p118 = scmp.lt.s32.totalorder %s15, 3
      %p119 = pnand %p117, %p118
      %p120 = pneg %p119
      // Predicated region
      $region9: #{tpu_custom_call.1} parent=5 // pred_check
        _
      $region10: #{tpu_custom_call.1} parent=5 // pred_check_branch
        %122 = sbr.rel (%p119) target = $region12
      $region11: #{tpu_custom_call.1} parent=5 // pred_region
        %s123 = ssub.s32 %s15, 1
        // Predicated region
        $region13: #{tpu_custom_call.1} parent=11 // pred_check
          %p124 = pneg %p53
        $region14: #{tpu_custom_call.1} parent=11 // pred_check_branch
          %126 = sbr.rel (%p124) target = $region16
        $region15: #{tpu_custom_call.1} parent=11 // pred_region
          %s127 = smul.u32 4, %s25
          %129 = vsyncadd [#allocation3], 0
          %s130 = scalar_lea.hbm %s0, %s127
          %s132 = sshll.u32 %s130, 4
          %s133 = int_to_ptr.hbm [resolvable:$true] %s132
          %s134 = sshll.u32 [#allocation2], 4
          %s135 = int_to_ptr.vmem [resolvable:$true] %s134
          %137 = dma.hbm_to_vmem [thread:$0]  %s133, 64, %s135, [#allocation3]
        $region16: #{tpu_custom_call.1} parent=11 // pred_fallthru
          _
      $region12: #{tpu_custom_call.1} parent=5 // pred_fallthru
        _
      %p138 = scmp.lt.s32.totalorder %s15, 2
      // Predicated region
      $region17: #{tpu_custom_call.1} parent=5 // pred_check
        %p139 = pneg %p138
      $region18: #{tpu_custom_call.1} parent=5 // pred_check_branch
        %141 = sbr.rel (%p139) target = $region20
      $region19: #{tpu_custom_call.1} parent=5 // pred_region
        // Predicated region
        $region21: #{tpu_custom_call.1} parent=19 // pred_check
          %p142 = pneg %p75
        $region22: #{tpu_custom_call.1} parent=19 // pred_check_branch
          %144 = sbr.rel (%p142) target = $region24
        $region23: #{tpu_custom_call.1} parent=19 // pred_region
          %s145 = sand.u32 %s65, 1
          %s146 = scalar_lea.sflag [#allocation6], %s145
          %s147 = sand.u32 %s65, 1
          %s148 = smul.addr %s147, 4
          %s149 = scalar_lea.vmem [#allocation5], %s148
          %s150 = smul.u32 4, %s23
          %152 = vsyncadd %s146, 0
          %s153 = smul.addr %s22, 4
          %s154 = sadd.s32 %s150, %s153
          %s155 = scalar_lea.hbm %s1, %s154
          %s157 = sshll.u32 %s155, 4
          %s158 = int_to_ptr.hbm [resolvable:$true] %s157
          %s159 = sshll.u32 %s149, 4
          %s160 = int_to_ptr.vmem [resolvable:$true] %s159
          %162 = dma.hbm_to_vmem [thread:$0]  %s158, 64, %s160, %s146
        $region24: #{tpu_custom_call.1} parent=19 // pred_fallthru
          _
      $region20: #{tpu_custom_call.1} parent=5 // pred_fallthru
        _
      %p163 = scmp.le.s32.totalorder 1, %s15
      %p164 = scmp.lt.s32.totalorder %s15, 3
      %p165 = pnand %p163, %p164
      %p166 = pneg %p165
      // Predicated region
      $region25: #{tpu_custom_call.1} parent=5 // pred_check
        _
      $region26: #{tpu_custom_call.1} parent=5 // pred_check_branch
        %168 = sbr.rel (%p165) target = $region28
      $region27: #{tpu_custom_call.1} parent=5 // pred_region
        %s169 = ssub.s32 %s15, 1
        // Predicated region
        $region29: #{tpu_custom_call.1} parent=27 // pred_check
          %p170 = pneg %p53
        $region30: #{tpu_custom_call.1} parent=27 // pred_check_branch
          %172 = sbr.rel (%p170) target = $region32
        $region31: #{tpu_custom_call.1} parent=27 // pred_region
          %174 = dma.done [#allocation3], 64
        $region32: #{tpu_custom_call.1} parent=27 // pred_fallthru
          _
        %s175 = sand.u32 %s68, 1
        %s176 = scalar_lea.sflag [#allocation6], %s175
        %s177 = sand.u32 %s68, 1
        %s178 = smul.addr %s177, 4
        %s179 = scalar_lea.vmem [#allocation5], %s178
        // Predicated region
        $region33: #{tpu_custom_call.1} parent=27 // pred_check
          %p180 = pneg %p81
        $region34: #{tpu_custom_call.1} parent=27 // pred_check_branch
          %182 = sbr.rel (%p180) target = $region36
        $region35: #{tpu_custom_call.1} parent=27 // pred_region
          %184 = dma.done %s176, 64
        $region36: #{tpu_custom_call.1} parent=27 // pred_fallthru
          _
        %p185 = pneg %p53
        %p186 = pneg %p50
        %s187 = sand.u32 %s68, 1
        %s188 = scalar_lea.sflag [#allocation6], %s187
        %s189 = sand.u32 %s68, 1
        %s190 = smul.addr %s189, 4
        %s191 = scalar_lea.vmem [#allocation5], %s190
        %p192 = pneg %p81
        %p193 = pneg %p78
        %p194 = pneg %p109
        %p195 = pneg %p106
        %s196 = sand.u32 %s96, 1
        %s197 = scalar_lea.sflag [#allocation4], %s196
        %s198 = sand.u32 %s96, 1
        %s199 = smul.addr %s198, 4
        %s200 = scalar_lea.vmem [#allocation7], %s199
        %s201 = smul.u32 4, %s25
        %s202 = smul.u32 4, %s25
        %s203 = smul.u32 4, %s25
        %v204 = vld [vmem:[%s179] sm:$0xf]
        %v205 = vld [vmem:[#allocation2] sm:$0xf]
        %v206 = vadd.f32 %v204, %v205
        %v207 = vlaneseq
        %vm208 = vcmp.ge.s32.totalorder %v207, 0
        %vm209 = vcmp.lt.s32.totalorder %v207, 416
        %vm210 = vmand %vm208, %vm209
        %211 = vst.msk [vmem:[%s200] sm:$0xf] %vm210, %v206
        %s212 = sand.u32 %s96, 1
        %s213 = scalar_lea.sflag [#allocation4], %s212
        %s214 = sand.u32 %s96, 1
        %s215 = smul.addr %s214, 4
        %s216 = scalar_lea.vmem [#allocation7], %s215
        // Predicated region
        $region37: #{tpu_custom_call.1} parent=27 // pred_check
          %p217 = pneg %p106
        $region38: #{tpu_custom_call.1} parent=27 // pred_check_branch
          %219 = sbr.rel (%p217) target = $region40
        $region39: #{tpu_custom_call.1} parent=27 // pred_region
          %s220 = smul.u32 4, %s25
          %222 = vsyncadd %s213, 0
          %s223 = smul.addr %s24, 4
          %s224 = sadd.s32 %s220, %s223
          %s225 = scalar_lea.hbm %s2, %s224
          %s227 = sshll.u32 %s216, 4
          %s228 = int_to_ptr.vmem [resolvable:$true] %s227
          %s229 = sshll.u32 %s225, 4
          %s230 = int_to_ptr.hbm [resolvable:$true] %s229
          %232 = dma.vmem_to_hbm [thread:$0]  %s228, 64, %s230, %s213
        $region40: #{tpu_custom_call.1} parent=27 // pred_fallthru
          _
      $region28: #{tpu_custom_call.1} parent=5 // pred_fallthru
        _
      %p233 = scmp.le.s32.totalorder 2, %s15
      // Predicated region
      $region41: #{tpu_custom_call.1} parent=5 // pred_check
        %p234 = pneg %p233
      $region42: #{tpu_custom_call.1} parent=5 // pred_check_branch
        %236 = sbr.rel (%p234) target = $region44
      $region43: #{tpu_custom_call.1} parent=5 // pred_region
        %s237 = ssub.s32 %s15, 2
        // Predicated region
        $region45: #{tpu_custom_call.1} parent=43 // pred_check
          %p238 = pneg %p112
        $region46: #{tpu_custom_call.1} parent=43 // pred_check_branch
          %240 = sbr.rel (%p238) target = $region48
        $region47: #{tpu_custom_call.1} parent=43 // pred_region
          %s241 = sand.u32 %s97, 1
          %s242 = scalar_lea.sflag [#allocation4], %s241
          %s243 = sand.u32 %s97, 1
          %s244 = smul.addr %s243, 4
          %s245 = scalar_lea.vmem [#allocation7], %s244
          %247 = dma.done %s242, 64
        $region48: #{tpu_custom_call.1} parent=43 // pred_fallthru
          _
      $region44: #{tpu_custom_call.1} parent=5 // pred_fallthru
        _
    $region6: #{tpu_custom_call.1} parent=1 // loop_footer
      %s19 = sadd.s32 1, %s15
    $region7: #{tpu_custom_call.1} parent=1 // loop_footer_branch
      %14 = sbr.rel target = $region3
    $region8: #{tpu_custom_call.1} parent=1 // loop_exit
      _
    %248 = vsyncpa [#allocation3], 1
    %s249 = scalar_lea.sflag [#allocation3], 1
    %250 = vsyncpa %s249, 1
    %251 = vsyncpa [#allocation6], 1
    %s252 = scalar_lea.sflag [#allocation6], 1
    %253 = vsyncpa %s252, 1
    %254 = vsyncpa [#allocation4], 1
    %s255 = scalar_lea.sflag [#allocation4], 1
    %256 = vsyncpa %s255, 1

</llo_original>
